<compile_context>
chip_gen: v5e
topology: v5e:2x2
jax: 0.10.0
libtpu: 0.0.40
codegen_flags: <defaults>
</compile_context>

<pallas_src>
import functools

import jax
import jax.numpy as jnp
from jax.experimental import pallas as pl
from jax.experimental.pallas import tpu as pltpu


def _round_up(v: int, m: int) -> int:
    return ((v + m - 1) // m) * m


def mlp_kernel(x_ref, w1_ref, b1_ref, w2_ref, b2_ref, o_ref):
    # x:  [TM, 128] f32      w1: [128, 64] f32   b1: [1, 64] f32
    # h:  [TM, 64]  f32      w2: [64, 10]  f32   b2: [1, 10] f32
    # out:[TM, 10]  f32
    h = jnp.dot(x_ref[...], w1_ref[...], preferred_element_type=jnp.float32)
    h = jnp.maximum(h + b1_ref[...], 0.0)                      # bias + ReLU
    y = jnp.dot(h, w2_ref[...], preferred_element_type=jnp.float32)
    o_ref[...] = (y + b2_ref[...]).astype(o_ref.dtype)


@functools.partial(jax.jit, static_argnames=("tm",))
def simple_model_forward(x, w1, b1, w2, b2, *, tm: int = 2048):
    """x: [B, 128], w1: [128, 64], b1: [64], w2: [64, 10], b2: [10] -> [B, 10]."""
    B, IN = x.shape            # IN = 128
    H = w1.shape[1]            # 64
    OUT = w2.shape[1]          # 10

    b1_2d = b1.reshape(1, H).astype(jnp.float32)
    b2_2d = b2.reshape(1, OUT).astype(jnp.float32)

    # Batch tiling: small batches get a single (rounded-to-8) tile; large batches
    # stream tm-row tiles.  tm multiple of 8 keeps the sublane constraint happy.
    tm = _round_up(tm, 8)
    tm_eff = min(tm, _round_up(B, 8))
    grid = (pl.cdiv(B, tm_eff),)   # ragged last block -> Pallas edge masking

    itemsize = 4  # everything f32
    cost = pl.CostEstimate(
        flops=2 * B * (IN * H + H * OUT),
        transcendentals=0,
        bytes_accessed=(B * IN * itemsize                 # x read
                        + B * OUT * itemsize              # out write
                        + (IN * H + H * OUT) * itemsize   # weights
                        + (H + OUT) * itemsize),          # biases
    )

    out = pl.pallas_call(
        mlp_kernel,
        out_shape=jax.ShapeDtypeStruct((B, OUT), x.dtype),
        grid=grid,
        in_specs=[
            pl.BlockSpec((tm_eff, IN), lambda i: (i, 0)),   # x: streamed per tile
            pl.BlockSpec((IN, H), lambda i: (0, 0)),        # w1: resident in VMEM
            pl.BlockSpec((1, H), lambda i: (0, 0)),         # b1: resident
            pl.BlockSpec((H, OUT), lambda i: (0, 0)),       # w2: resident
            pl.BlockSpec((1, OUT), lambda i: (0, 0)),       # b2: resident
        ],
        out_specs=pl.BlockSpec((tm_eff, OUT), lambda i: (i, 0)),
        compiler_params=pltpu.CompilerParams(
            dimension_semantics=("parallel",)),             # megacore / dual-TC shardable
        cost_estimate=cost,
    )(x, w1, b1_2d, w2, b2_2d)

    return out


def init_params(key):
    # Mimic PyTorch nn.Linear defaults: U(-1/sqrt(fan_in), 1/sqrt(fan_in)).
    k1, k2, k3, k4 = jax.random.split(key, 4)
    bound1 = 1.0 / jnp.sqrt(128.0)
    bound2 = 1.0 / jnp.sqrt(64.0)
    w1 = jax.random.uniform(k1, (128, 64), jnp.float32, -bound1, bound1)  # (in, out)
    b1 = jax.random.uniform(k2, (64,), jnp.float32, -bound1, bound1)
    w2 = jax.random.uniform(k3, (64, 10), jnp.float32, -bound2, bound2)   # (in, out)
    b2 = jax.random.uniform(k4, (10,), jnp.float32, -bound2, bound2)
    return w1, b1, w2, b2


def _reference(x, w1, b1, w2, b2):
    return jnp.maximum(x @ w1 + b1[None, :], 0.0) @ w2 + b2[None, :]


if __name__ == "__main__":
    key = jax.random.PRNGKey(0)
    kx, kp = jax.random.split(key)
    w1, b1, w2, b2 = init_params(kp)

    # Small-batch path (single tile).
    B = 8
    x = jax.random.normal(kx, (B, 128), jnp.float32)
    out = jax.block_until_ready(simple_model_forward(x, w1, b1, w2, b2))
    assert out.shape == (B, 10)
    ref = _reference(x, w1, b1, w2, b2)
    assert jnp.allclose(out, ref, atol=2e-2, rtol=2e-2), (
        f"max abs err {jnp.max(jnp.abs(out - ref))}")

    # Multi-tile path with a ragged last block (exercises cdiv-grid edge masking).
    B2 = 520
    x2 = jax.random.normal(kx, (B2, 128), jnp.float32)
    out2 = jax.block_until_ready(
        simple_model_forward(x2, w1, b1, w2, b2, tm=256))
    ref2 = _reference(x2, w1, b1, w2, b2)
    assert out2.shape == (B2, 10)
    assert jnp.allclose(out2, ref2, atol=2e-2, rtol=2e-2), (
        f"max abs err {jnp.max(jnp.abs(out2 - ref2))}")

    print("KERNEL_OK")
</pallas_src>

<mosaic_0001>
module attributes {stable_mosaic.version = 11 : i64} {
  func.func @mlp_kernel(%arg0: i32, %arg1: memref<8x128xf32, #tpu.memory_space<vmem>>, %arg2: memref<128x64xf32, #tpu.memory_space<vmem>>, %arg3: memref<1x64xf32, #tpu.memory_space<vmem>>, %arg4: memref<64x10xf32, #tpu.memory_space<vmem>>, %arg5: memref<1x10xf32, #tpu.memory_space<vmem>>, %arg6: memref<8x10xf32, #tpu.memory_space<vmem>>) attributes {dimension_semantics = [#tpu.dimension_semantics<parallel>], iteration_bounds = array<i64: 1>, scalar_prefetch = 0 : i64, scratch_operands = 0 : i64, tpu.core_type = #tpu.core_type<tc>, window_params = [{transform_indices = @transform_0, window_bounds = array<i64: 8, 128>}, {pipeline_mode = #tpu.pipeline_mode<synchronous>, transform_indices = @transform_1, window_bounds = array<i64: 128, 64>}, {pipeline_mode = #tpu.pipeline_mode<synchronous>, transform_indices = @transform_2, window_bounds = array<i64: 1, 64>}, {pipeline_mode = #tpu.pipeline_mode<synchronous>, transform_indices = @transform_3, window_bounds = array<i64: 64, 10>}, {pipeline_mode = #tpu.pipeline_mode<synchronous>, transform_indices = @transform_4, window_bounds = array<i64: 1, 10>}, {transform_indices = @transform_5, window_bounds = array<i64: 8, 10>}]} {
    %c0 = arith.constant 0 : index
    %c0_0 = arith.constant 0 : index
    %0 = vector.load %arg1[%c0, %c0_0] : memref<8x128xf32, #tpu.memory_space<vmem>>, vector<8x128xf32>
    %c0_1 = arith.constant 0 : index
    %c0_2 = arith.constant 0 : index
    %1 = vector.load %arg2[%c0_1, %c0_2] : memref<128x64xf32, #tpu.memory_space<vmem>>, vector<128x64xf32>
    %cst = arith.constant dense<0.000000e+00> : vector<8x64xf32>
    %2 = tpu.matmul %0, %1, %cst {dimension_numbers = #tpu.dot_dimension_numbers<[1], [0], [0], [1], [0, 0, 1, 1], [], []>} : vector<8x128xf32>, vector<128x64xf32>, vector<8x64xf32> -> vector<8x64xf32>
    %c0_3 = arith.constant 0 : index
    %c0_4 = arith.constant 0 : index
    %3 = vector.load %arg3[%c0_3, %c0_4] : memref<1x64xf32, #tpu.memory_space<vmem>>, vector<1x64xf32>
    %4 = vector.broadcast %3 : vector<1x64xf32> to vector<8x64xf32>
    %5 = arith.addf %2, %4 : vector<8x64xf32>
    %cst_5 = arith.constant 0.000000e+00 : f32
    %6 = vector.broadcast %cst_5 : f32 to vector<8x64xf32>
    %7 = arith.maximumf %5, %6 : vector<8x64xf32>
    %c0_6 = arith.constant 0 : index
    %c0_7 = arith.constant 0 : index
    %8 = vector.load %arg4[%c0_6, %c0_7] : memref<64x10xf32, #tpu.memory_space<vmem>>, vector<64x10xf32>
    %cst_8 = arith.constant dense<0.000000e+00> : vector<8x10xf32>
    %9 = tpu.matmul %7, %8, %cst_8 {dimension_numbers = #tpu.dot_dimension_numbers<[1], [0], [0], [1], [0, 0, 1, 1], [], []>} : vector<8x64xf32>, vector<64x10xf32>, vector<8x10xf32> -> vector<8x10xf32>
    %c0_9 = arith.constant 0 : index
    %c0_10 = arith.constant 0 : index
    %10 = vector.load %arg5[%c0_9, %c0_10] : memref<1x10xf32, #tpu.memory_space<vmem>>, vector<1x10xf32>
    %11 = vector.broadcast %10 : vector<1x10xf32> to vector<8x10xf32>
    %12 = arith.addf %9, %11 : vector<8x10xf32>
    %c0_11 = arith.constant 0 : index
    %c0_12 = arith.constant 0 : index
    %13 = vector.load %arg6[%c0_11, %c0_12] : memref<8x10xf32, #tpu.memory_space<vmem>>, vector<8x10xf32>
    tpu.vector_store %arg6[%c0_11, %c0_12], %12 {strides = array<i32>} : memref<8x10xf32, #tpu.memory_space<vmem>>, vector<8x10xf32>,
    return
  }
  func.func @transform_0(%arg0: i32) -> (i32, i32) {
    %c0_i32 = arith.constant 0 : i32
    %c0_i32_0 = arith.constant 0 : i32
    return %arg0, %c0_i32 : i32, i32
  }
  func.func @transform_1(%arg0: i32) -> (i32, i32) {
    %c0_i32 = arith.constant 0 : i32
    %c0_i32_0 = arith.constant 0 : i32
    %c0_i32_1 = arith.constant 0 : i32
    return %c0_i32, %c0_i32_0 : i32, i32
  }
  func.func @transform_2(%arg0: i32) -> (i32, i32) {
    %c0_i32 = arith.constant 0 : i32
    %c0_i32_0 = arith.constant 0 : i32
    %c0_i32_1 = arith.constant 0 : i32
    return %c0_i32, %c0_i32_0 : i32, i32
  }
  func.func @transform_3(%arg0: i32) -> (i32, i32) {
    %c0_i32 = arith.constant 0 : i32
    %c0_i32_0 = arith.constant 0 : i32
    %c0_i32_1 = arith.constant 0 : i32
    return %c0_i32, %c0_i32_0 : i32, i32
  }
  func.func @transform_4(%arg0: i32) -> (i32, i32) {
    %c0_i32 = arith.constant 0 : i32
    %c0_i32_0 = arith.constant 0 : i32
    %c0_i32_1 = arith.constant 0 : i32
    return %c0_i32, %c0_i32_0 : i32, i32
  }
  func.func @transform_5(%arg0: i32) -> (i32, i32) {
    %c0_i32 = arith.constant 0 : i32
    %c0_i32_0 = arith.constant 0 : i32
    return %arg0, %c0_i32 : i32, i32
  }
}

</mosaic_0001>

<llo_original>
// kernel: simple_model_forward.1
$region0: #{simple_model_forward.1}
  #allocation0 [shape = 'u32[]', space=smem, size = 0x4, offset = 0x4, fixed_abs, tag = 'smem constant byte address 0x4 - core index']
  #allocation1 [shape = 'u32[72,128]{1,0:T(1,128)}', space=vmem, size = 0x9000, scoped, tag = 'internal scratch']
  %s0 = inlined_call_operand.vmem [shape: f32[8,128], index: 0, kind: input, shape index: {}]
  %s1 = inlined_call_operand.vmem [shape: f32[128,64], index: 1, kind: input, shape index: {}]
  %s2 = inlined_call_operand.vmem [shape: f32[1,64], index: 2, kind: input, shape index: {}]
  %s3 = inlined_call_operand.vmem [shape: f32[64,10], index: 3, kind: input, shape index: {}]
  %s4 = inlined_call_operand.vmem [shape: f32[1,10], index: 4, kind: input, shape index: {}]
  %s5 = inlined_call_operand.hbm [shape: f32[8,10], index: 5, kind: output, shape index: {}]
  %s6 = sld [smem:[#allocation0]]
  $region30: #{simple_model_forward.1} parent=0
    _
  %s8 = ssub.s32 1, %s6
  %s9 = scalar_select 0, %s8, %s6
  $region1: #{simple_model_forward.1} parent=0
    #allocation2 [shape = 'u8[4096]{0}', space=vmem, size = 0x1000, scoped, tag = 'output window, operand 0, single buffered']
    #allocation3 [shape = 's32[1]{0}', space=sflag, size = 0x4, scoped, tag = 'scoped memory for simple_model_forward.1']
    %10 = vsyncpa [#allocation3], 0
    // Predicated region
    $region2: #{simple_model_forward.1} parent=1 // pred_check
      _
    $region3: #{simple_model_forward.1} parent=1 // pred_check_branch
      %12 = sbr.rel (0) target = $region5
    $region4: #{simple_model_forward.1} parent=1 // pred_region
      _
    $region5: #{simple_model_forward.1} parent=1 // pred_fallthru
      _
    // Predicated region
    $region6: #{simple_model_forward.1} parent=1 // pred_check
      _
    $region7: #{simple_model_forward.1} parent=1 // pred_check_branch
      %14 = sbr.rel (0) target = $region9
    $region8: #{simple_model_forward.1} parent=1 // pred_region
      _
    $region9: #{simple_model_forward.1} parent=1 // pred_fallthru
      _
    // Predicated region
    $region10: #{simple_model_forward.1} parent=1 // pred_check
      _
    $region11: #{simple_model_forward.1} parent=1 // pred_check_branch
      %16 = sbr.rel (0) target = $region13
    $region12: #{simple_model_forward.1} parent=1 // pred_region
      _
    $region13: #{simple_model_forward.1} parent=1 // pred_fallthru
      _
    // Predicated region
    $region14: #{simple_model_forward.1} parent=1 // pred_check
      _
    $region15: #{simple_model_forward.1} parent=1 // pred_check_branch
      %18 = sbr.rel (0) target = $region17
    $region16: #{simple_model_forward.1} parent=1 // pred_region
      _
    $region17: #{simple_model_forward.1} parent=1 // pred_fallthru
      _
    // Predicated region
    $region18: #{simple_model_forward.1} parent=1 // pred_check
      _
    $region19: #{simple_model_forward.1} parent=1 // pred_check_branch
      %20 = sbr.rel (0) target = $region21
    $region20: #{simple_model_forward.1} parent=1 // pred_region
      _
    $region21: #{simple_model_forward.1} parent=1 // pred_fallthru
      _
    %v21 = vld [vmem:[%s0] sm:$0xff]
    %v22 = vld [vmem:[%s1] sm:$0xff]
    %v23 = vld [vmem:[%s1 + $0x8] sm:$0xff]
    %v24 = vld [vmem:[%s1 + $0x10] sm:$0xff]
    %v25 = vld [vmem:[%s1 + $0x18] sm:$0xff]
    %v26 = vld [vmem:[%s1 + $0x20] sm:$0xff]
    %v27 = vld [vmem:[%s1 + $0x28] sm:$0xff]
    %v28 = vld [vmem:[%s1 + $0x30] sm:$0xff]
    %v29 = vld [vmem:[%s1 + $0x38] sm:$0xff]
    %v30 = vld [vmem:[%s1 + $0x40] sm:$0xff]
    %v31 = vld [vmem:[%s1 + $0x48] sm:$0xff]
    %v32 = vld [vmem:[%s1 + $0x50] sm:$0xff]
    %v33 = vld [vmem:[%s1 + $0x58] sm:$0xff]
    %v34 = vld [vmem:[%s1 + $0x60] sm:$0xff]
    %v35 = vld [vmem:[%s1 + $0x68] sm:$0xff]
    %v36 = vld [vmem:[%s1 + $0x70] sm:$0xff]
    %v37 = vld [vmem:[%s1 + $0x78] sm:$0xff]
    %v38 = vld [vmem:[%s2] sm:$0x1]
    %v40 = vperm.slane %v38, 0
    %42 = vmatpush.msra.mxu0 %v37
    %43 = vmatpush.msra.mxu0 %v36
    %44 = vmatpush.msra.mxu0 %v35
    %45 = vmatpush.msra.mxu0 %v34
    %46 = vmatpush.msra.mxu0 %v33
    %47 = vmatpush.msra.mxu0 %v32
    %48 = vmatpush.msra.mxu0 %v31
    %49 = vmatpush.msra.mxu0 %v30
    %50 = vmatpush.msra.mxu0 %v29
    %51 = vmatpush.msra.mxu0 %v28
    %52 = vmatpush.msra.mxu0 %v27
    %53 = vmatpush.msra.mxu0 %v26
    %54 = vmatpush.msra.mxu0 %v25
    %55 = vmatpush.msra.mxu0 %v24
    %56 = vmatpush.msra.mxu0 %v23
    %57 = vmatpush.msra.mxu0 %v22
    %58 = vmatmul.f32.gmra.mxu0 %v21
    %v59 = vpop.f32.mrf.mxu0
    %v60 = vadd.f32 %v40, %v59
    %61 = vdwg.mxu0
    %v62 = vmax.f32 %v60, 0.0
    %v63 = vld [vmem:[%s3] sm:$0xff]
    %v64 = vld [vmem:[%s3 + $0x8] sm:$0xff]
    %v65 = vld [vmem:[%s3 + $0x10] sm:$0xff]
    %v66 = vld [vmem:[%s3 + $0x18] sm:$0xff]
    %v67 = vld [vmem:[%s3 + $0x20] sm:$0xff]
    %v68 = vld [vmem:[%s3 + $0x28] sm:$0xff]
    %v69 = vld [vmem:[%s3 + $0x30] sm:$0xff]
    %v70 = vld [vmem:[%s3 + $0x38] sm:$0xff]
    %v71 = vld [vmem:[%s4] sm:$0x1]
    %v73 = vperm.slane %v71, 0
    %vm75 = vcmask 523264
    %v77 = vsel %vm75, %v62, 0
    %79 = vmatpush.msra.mxu0 0.0
    %80 = vmatpush.msra.mxu0 0.0
    %81 = vmatpush.msra.mxu0 0.0
    %82 = vmatpush.msra.mxu0 0.0
    %83 = vmatpush.msra.mxu0 0.0
    %84 = vmatpush.msra.mxu0 0.0
    %85 = vmatpush.msra.mxu0 0.0
    %86 = vmatpush.msra.mxu0 0.0
    %87 = vmatpush.msra.mxu0 %v70
    %88 = vmatpush.msra.mxu0 %v69
    %89 = vmatpush.msra.mxu0 %v68
    %90 = vmatpush.msra.mxu0 %v67
    %91 = vmatpush.msra.mxu0 %v66
    %92 = vmatpush.msra.mxu0 %v65
    %93 = vmatpush.msra.mxu0 %v64
    %94 = vmatpush.msra.mxu0 %v63
    %95 = vmatmul.f32.gmra.mxu0 %v77
    %v96 = vpop.f32.mrf.mxu0
    %v97 = vadd.f32 %v73, %v96
    %98 = vdwg.mxu0
    %vm99 = vcmask 80896
    %100 = vst.msk [vmem:[#allocation2] sm:$0xff] %vm99, %v97
    // Predicated region
    $region22: #{simple_model_forward.1} parent=1 // pred_check
      _
    $region23: #{simple_model_forward.1} parent=1 // pred_check_branch
      %102 = sbr.rel (0) target = $region25
    $region24: #{simple_model_forward.1} parent=1 // pred_region
      %104 = vsyncadd [#allocation3], 0
      %s106 = sshll.u32 [#allocation2], 4
      %s107 = int_to_ptr.vmem [resolvable:$true] %s106
      %s108 = sshll.u32 %s5, 4
      %s109 = int_to_ptr.hbm [resolvable:$true] %s108
      %111 = dma.vmem_to_hbm [thread:$0]  %s107, 128, %s109, [#allocation3]
    $region25: #{simple_model_forward.1} parent=1 // pred_fallthru
      _
    // Predicated region
    $region26: #{simple_model_forward.1} parent=1 // pred_check
      _
    $region27: #{simple_model_forward.1} parent=1 // pred_check_branch
      %113 = sbr.rel (0) target = $region29
    $region28: #{simple_model_forward.1} parent=1 // pred_region
      %115 = dma.done [#allocation3], 128
    $region29: #{simple_model_forward.1} parent=1 // pred_fallthru
      _
    %116 = vsyncpa [#allocation3], 1

</llo_original>
